<compile_context>
chip_gen: v7x
topology: tpu7x:2x2x1
jax: 0.10.0
libtpu: 0.0.40
codegen_flags: <defaults>
</compile_context>

<pallas_src>
import functools
import math

import jax
import jax.numpy as jnp
from jax.experimental import pallas as pl
from jax.experimental.pallas import tpu as pltpu

F32 = jnp.float32
BF16 = jnp.bfloat16                   # MXU operand dtype (accumulation stays f32)
VMEM_LIMIT = 48 * 1024 * 1024


# ----------------------------- in-kernel helpers -----------------------------

def _layer_norm(x, w=None, b=None, eps=1e-5):
    mu = jnp.mean(x, axis=-1, keepdims=True)
    var = jnp.mean(jnp.square(x - mu), axis=-1, keepdims=True)
    y = (x - mu) * jax.lax.rsqrt(var + eps)
    if w is not None:
        y = y * w
    if b is not None:
        y = y + b
    return y


def _mm(x, w_ref):
    """MXU matmul: bf16 operands, f32 accumulation."""
    return jnp.dot(x.astype(BF16), w_ref[...], preferred_element_type=jnp.float32)


def _adaln(a, s, s_lnw_ref, gs_w_ref):
    """AdaLN (AF3 Alg. 26) with gate/skip projections fused into one [C, 2C] matmul."""
    C = a.shape[-1]
    a_n = _layer_norm(a)
    s_n = _layer_norm(s, w=s_lnw_ref[...])
    gs = _mm(s_n, gs_w_ref)                        # [rows, 2C] = [gate | skip]
    return jax.nn.sigmoid(gs[:, :C]) * a_n + gs[:, C:]


# ----------------------------- pair-bias kernel ------------------------------

def pair_bias_kernel(z_ref, maskf_ref, ln_w_ref, ln_b_ref, w_ref, out_ref):
    """out[h, i*N + j] = LinearNoBias(LayerNorm(pair[i, j, :]))[h] + mask_bias[j]."""
    ti, n, p = z_ref.shape
    z = z_ref[...].reshape(ti * n, p)              # merge major dims (cheap)
    zn = _layer_norm(z, w=ln_w_ref[...], b=ln_b_ref[...]).astype(BF16)
    # [P, H] x [TI*N, P] -> [H, TI*N]  (heads in sublanes, flattened pairs in lanes)
    b = jax.lax.dot_general(w_ref[...], zn, (((0,), (1,)), ((), ())),
                            preferred_element_type=jnp.float32)
    out_ref[...] = b + maskf_ref[...]              # fold key mask in once


def run_pair_bias(pair_repr, mask_flat, ln_w, ln_b, w, *, row_tile=128):
    N, _, P = pair_repr.shape
    H = w.shape[-1]
    TI = min(row_tile, N)
    assert N % TI == 0
    bias2d = pl.pallas_call(
        pair_bias_kernel,
        out_shape=jax.ShapeDtypeStruct((H, N * N), jnp.float32),
        grid_spec=pltpu.PrefetchScalarGridSpec(
            num_scalar_prefetch=0,
            grid=(N // TI,),
            in_specs=[
                pl.BlockSpec((TI, N, P), lambda i: (i, 0, 0)),
                pl.BlockSpec((1, TI * N), lambda i: (0, i)),
                pl.BlockSpec((1, P), lambda i: (0, 0)),
                pl.BlockSpec((1, P), lambda i: (0, 0)),
                pl.BlockSpec((P, H), lambda i: (0, 0)),
            ],
            out_specs=pl.BlockSpec((H, TI * N), lambda i: (0, i)),
        ),
        compiler_params=pltpu.CompilerParams(
            dimension_semantics=("parallel",),
            vmem_limit_bytes=VMEM_LIMIT),
    )(pair_repr, mask_flat, ln_w, ln_b, w)
    # free (row-major) reshape on the host side; no data movement, no transpose round trip
    return bias2d.reshape(H, N, N)


# --------------------------- fused QKVG projection ----------------------------

def qkvg_kernel(x_ref, s_ref, a_slnw_ref, a_gs_ref, w_qkvg_ref, b_qkvg_ref,
                qg_ref, kv_ref):
    """AdaLN + single fused [C, 4C] projection with column order [q | g | k | v]."""
    x = x_ref[0]
    s = s_ref[0]
    C = x.shape[-1]
    a = _adaln(x, s, a_slnw_ref, a_gs_ref)
    qkvg = _mm(a, w_qkvg_ref) + b_qkvg_ref[...]    # (TR, 4C); bias nonzero only on q cols
    qg_ref[0] = qkvg[:, :2 * C].astype(BF16)       # [q | g]   (g sigmoid applied later)
    kv_ref[0] = qkvg[:, 2 * C:].astype(BF16)       # [k | v]


def run_qkvg(single_repr, single_proj, p, *, row_tile=128):
    S, N, C = single_repr.shape
    TR = min(row_tile, N)
    assert N % TR == 0
    row_spec = lambda s_, r: (s_, r, 0)
    const2 = lambda s_, r: (0, 0)
    return pl.pallas_call(
        qkvg_kernel,
        out_shape=(jax.ShapeDtypeStruct((S, N, 2 * C), BF16),
                   jax.ShapeDtypeStruct((S, N, 2 * C), BF16)),
        grid_spec=pltpu.PrefetchScalarGridSpec(
            num_scalar_prefetch=0,
            grid=(S, N // TR),
            in_specs=[
                pl.BlockSpec((1, TR, C), row_spec),
                pl.BlockSpec((1, TR, C), row_spec),
                pl.BlockSpec((1, C), const2),
                pl.BlockSpec((C, 2 * C), const2),
                pl.BlockSpec((C, 4 * C), const2),
                pl.BlockSpec((1, 4 * C), const2),
            ],
            out_specs=(pl.BlockSpec((1, TR, 2 * C), row_spec),
                       pl.BlockSpec((1, TR, 2 * C), row_spec)),
        ),
        compiler_params=pltpu.CompilerParams(
            dimension_semantics=("parallel", "arbitrary"),
            vmem_limit_bytes=VMEM_LIMIT),
    )(single_repr, single_proj, p["a_slnw"], p["a_gs_w"], p["w_qkvg"], p["b_qkvg"])


# ------------------- attention + output gate + transition ---------------------

def attn_transition_kernel(qg_ref, kv_ref, bias_ref, x_ref, s_ref,
                           wo_ref, og_w_ref, og_b_ref,
                           t_slnw_ref, t_gs_ref, t_hid_ref, t_out_ref,
                           t_og_w_ref, t_og_b_ref,
                           out_ref, *, num_heads):
    x = x_ref[0]                                   # (TQ, C) f32 residual input
    s = s_ref[0]                                   # (TQ, C) f32 conditioning
    TQ, C = x.shape
    H = num_heads
    D = C // H
    scale = 1.0 / math.sqrt(D)

    # -------- batched multi-head attention (all heads in one MXU stream) --------
    qg = qg_ref[0]                                 # (TQ, 2C) bf16: [q | g]
    kv = kv_ref[0]                                 # (N,  2C) bf16: [k | v]
    N = kv.shape[0]

    qgh = jnp.transpose(qg.reshape(TQ, 2 * H, D), (1, 0, 2))    # (2H, TQ, D)
    kvh = jnp.transpose(kv.reshape(N, 2 * H, D), (1, 0, 2))     # (2H, N,  D)
    qh, gh = qgh[:H], qgh[H:]
    kh, vh = kvh[:H], kvh[H:]

    logits = jnp.einsum('hqd,hkd->hqk', qh, kh,
                        preferred_element_type=jnp.float32) * scale
    logits = logits + bias_ref[...]                # pair bias (key mask already folded in)
    m = jnp.max(logits, axis=-1, keepdims=True)
    p = jnp.exp(logits - m)
    p = p * pl.reciprocal(jnp.sum(p, axis=-1, keepdims=True), approx=True)

    o_h = jnp.einsum('hqk,hkd->hqd', p.astype(BF16), vh,
                     preferred_element_type=jnp.float32)         # (H, TQ, D) f32
    o_h = o_h * jax.nn.sigmoid(gh.astype(jnp.float32))           # input gating
    o = jnp.transpose(o_h, (1, 0, 2)).reshape(TQ, C)
    o = _mm(o, wo_ref)

    # adaLN-Zero output gate conditioned on single_proj (bias init -2.0)
    out_gate = jax.nn.sigmoid(_mm(s, og_w_ref) + og_b_ref[...])
    x1 = x + out_gate * o                          # residual 1

    # -------- ConditionedTransitionBlock (AF3 Alg. 25, n = 2, SwiGLU) --------
    b = _adaln(x1, s, t_slnw_ref, t_gs_ref)
    hid = _mm(b, t_hid_ref)                        # (TQ, 4C) = [swish-gate 2C | value 2C]
    hid = jax.nn.silu(hid[:, :2 * C]) * hid[:, 2 * C:]
    t_o = _mm(hid, t_out_ref)
    t_gate = jax.nn.sigmoid(_mm(s, t_og_w_ref) + t_og_b_ref[...])
    out_ref[0] = (x1 + t_gate * t_o).astype(out_ref.dtype)       # residual 2


_ATTN_WEIGHT_KEYS = ("wo", "og_w", "og_b", "t_slnw", "t_gs_w", "t_hid_w",
                     "t_out_w", "t_og_w", "t_og_b")


def run_attn_transition(single_repr, single_proj, qg, kv, bias_hnn, p, *, q_tile=128):
    S, N, C = single_repr.shape
    H = bias_hnn.shape[0]
    TQ = min(q_tile, N)
    assert N % TQ == 0
    weights = [p[k] for k in _ATTN_WEIGHT_KEYS]

    def const_spec(arr):
        r = arr.ndim
        return pl.BlockSpec(arr.shape, lambda s_, q_, _r=r: (0,) * _r)

    qrow = lambda s_, q_: (s_, q_, 0)
    in_specs = [
        pl.BlockSpec((1, TQ, 2 * C), qrow),                        # qg (query tile)
        pl.BlockSpec((1, N, 2 * C), lambda s_, q_: (s_, 0, 0)),    # kv (all keys)
        pl.BlockSpec((H, TQ, N), lambda s_, q_: (0, q_, 0)),       # pair bias (+mask)
        pl.BlockSpec((1, TQ, C), qrow),                            # single_repr
        pl.BlockSpec((1, TQ, C), qrow),                            # single_proj
    ] + [const_spec(w) for w in weights]

    kernel = functools.partial(attn_transition_kernel, num_heads=H)
    return pl.pallas_call(
        kernel,
        out_shape=jax.ShapeDtypeStruct((S, N, C), jnp.float32),
        grid_spec=pltpu.PrefetchScalarGridSpec(
            num_scalar_prefetch=0,
            grid=(S, N // TQ),
            in_specs=in_specs,
            out_specs=pl.BlockSpec((1, TQ, C), qrow),
        ),
        compiler_params=pltpu.CompilerParams(
            dimension_semantics=("parallel", "arbitrary"),
            vmem_limit_bytes=VMEM_LIMIT),
    )(qg, kv, bias_hnn, single_repr, single_proj, *weights)


# ------------------------------- module wrapper -------------------------------

def diffusion_transformer_forward(block_params, single_repr, single_proj, pair_repr,
                                  mask=None):
    """DiffusionTransformer.forward: sequentially applies the blocks, returns single_repr."""
    S, N, C = single_repr.shape
    if mask is None:
        mask = jnp.ones((N,), jnp.float32)
    mask_bias = (-1e9 * (1.0 - mask.astype(jnp.float32))).reshape(1, N)
    mask_flat = jnp.tile(mask_bias, (1, N))        # (1, N*N): folded into pair bias once

    single_repr = single_repr.astype(jnp.float32)
    single_proj = single_proj.astype(jnp.float32)

    for p in block_params:
        bias_hnn = run_pair_bias(pair_repr, mask_flat, p["pair_ln_w"],
                                 p["pair_ln_b"], p["pair_w"])
        qg, kv = run_qkvg(single_repr, single_proj, p)
        single_repr = run_attn_transition(single_repr, single_proj, qg, kv, bias_hnn, p)
    # TODO(synk): blocks_per_ckpt / clear_cache_between_blocks / dropout=0.0 /
    # use_deepspeed_evo_attention are training/runtime options with no effect on forward
    # values; not modeled.
    return single_repr


def init_block_params(key, c_token, c_pair, no_heads):
    C, P, H = c_token, c_pair, no_heads
    keys = jax.random.split(key, 10)
    std = 0.02

    def w(k, shape):
        return (std * jax.random.normal(k, shape, F32)).astype(BF16)

    return {
        # pair-bias head
        "pair_ln_w": jnp.ones((1, P), F32),
        "pair_ln_b": jnp.zeros((1, P), F32),
        "pair_w": w(keys[0], (P, H)),
        # AttentionPairBias (AdaLN + fused projections)
        "a_slnw": jnp.ones((1, C), F32),           # AdaLN s-LayerNorm scale
        "a_gs_w": w(keys[1], (C, 2 * C)),          # fused [gate | skip]
        "w_qkvg": w(keys[2], (C, 4 * C)),          # fused [q | g | k | v]
        "b_qkvg": jnp.zeros((1, 4 * C), F32),      # only q columns carry a bias
        "wo": w(keys[3], (C, C)),
        "og_w": w(keys[4], (C, C)),
        "og_b": jnp.full((1, C), -2.0, F32),       # adaLN-Zero gate bias
        # ConditionedTransitionBlock (n = 2)
        "t_slnw": jnp.ones((1, C), F32),
        "t_gs_w": w(keys[5], (C, 2 * C)),
        "t_hid_w": w(keys[6], (C, 4 * C)),         # fused [swish-gate 2C | value 2C]
        "t_out_w": w(keys[7], (2 * C, C)),
        "t_og_w": w(keys[8], (C, C)),
        "t_og_b": jnp.full((1, C), -2.0, F32),
    }


if __name__ == "__main__":
    # Small config consistent with the module (c_token, c_pair, heads, blocks scaled down).
    C_TOKEN, C_PAIR, NO_HEADS, NO_BLOCKS = 64, 16, 4, 2
    S, N = 2, 16

    key = jax.random.PRNGKey(0)
    k1, k2, k3, kp = jax.random.split(key, 4)
    single_repr = jax.random.normal(k1, (S, N, C_TOKEN), jnp.float32)
    single_proj = jax.random.normal(k2, (S, N, C_TOKEN), jnp.float32)
    pair_repr = jax.random.normal(k3, (N, N, C_PAIR), jnp.float32)
    mask = jnp.ones((N,), jnp.float32)

    block_params = [init_block_params(k, C_TOKEN, C_PAIR, NO_HEADS)
                    for k in jax.random.split(kp, NO_BLOCKS)]

    out = diffusion_transformer_forward(block_params, single_repr, single_proj,
                                        pair_repr, mask)
    out = jax.block_until_ready(out)
    assert out.shape == (S, N, C_TOKEN)
    assert bool(jnp.all(jnp.isfinite(out)))
    print("KERNEL_OK")
</pallas_src>

<mosaic_0001>
module attributes {stable_mosaic.version = 11 : i64} {
  func.func @pair_bias_kernel(%arg0: i32, %arg1: memref<16x16x16xf32, #tpu.memory_space<vmem>>, %arg2: memref<1x256xf32, #tpu.memory_space<vmem>>, %arg3: memref<1x16xf32, #tpu.memory_space<vmem>>, %arg4: memref<1x16xf32, #tpu.memory_space<vmem>>, %arg5: memref<16x4xbf16, #tpu.memory_space<vmem>>, %arg6: memref<4x256xf32, #tpu.memory_space<vmem>>) attributes {dimension_semantics = [#tpu.dimension_semantics<parallel>], iteration_bounds = array<i64: 1>, scalar_prefetch = 0 : i64, scratch_operands = 0 : i64, tpu.core_type = #tpu.core_type<tc>, window_params = [{transform_indices = @transform_0, window_bounds = array<i64: 16, 16, 16>}, {transform_indices = @transform_1, window_bounds = array<i64: 1, 256>}, {pipeline_mode = #tpu.pipeline_mode<synchronous>, transform_indices = @transform_2, window_bounds = array<i64: 1, 16>}, {pipeline_mode = #tpu.pipeline_mode<synchronous>, transform_indices = @transform_3, window_bounds = array<i64: 1, 16>}, {pipeline_mode = #tpu.pipeline_mode<synchronous>, transform_indices = @transform_4, window_bounds = array<i64: 16, 4>}, {transform_indices = @transform_5, window_bounds = array<i64: 4, 256>}]} {
    %c0 = arith.constant 0 : index
    %c0_0 = arith.constant 0 : index
    %c0_1 = arith.constant 0 : index
    %0 = vector.load %arg1[%c0, %c0_0, %c0_1] : memref<16x16x16xf32, #tpu.memory_space<vmem>>, vector<16x16x16xf32>
    %1 = vector.shape_cast %0 : vector<16x16x16xf32> to vector<256x16xf32>
    %c0_2 = arith.constant 0 : index
    %c0_3 = arith.constant 0 : index
    %2 = vector.load %arg3[%c0_2, %c0_3] : memref<1x16xf32, #tpu.memory_space<vmem>>, vector<1x16xf32>
    %c0_4 = arith.constant 0 : index
    %c0_5 = arith.constant 0 : index
    %3 = vector.load %arg4[%c0_4, %c0_5] : memref<1x16xf32, #tpu.memory_space<vmem>>, vector<1x16xf32>
    %cst = arith.constant dense<0.000000e+00> : vector<256xf32>
    %4 = vector.multi_reduction <add>, %1, %cst [1] : vector<256x16xf32> to vector<256xf32>
    %5 = vector.shape_cast %4 : vector<256xf32> to vector<256x1xf32>
    %cst_6 = arith.constant 1.600000e+01 : f32
    %6 = vector.broadcast %cst_6 : f32 to vector<256x1xf32>
    %7 = arith.divf %5, %6 : vector<256x1xf32>
    %8 = vector.broadcast %7 : vector<256x1xf32> to vector<256x16xf32>
    %9 = arith.subf %1, %8 : vector<256x16xf32>
    %10 = arith.mulf %9, %9 : vector<256x16xf32>
    %cst_7 = arith.constant dense<0.000000e+00> : vector<256xf32>
    %11 = vector.multi_reduction <add>, %10, %cst_7 [1] : vector<256x16xf32> to vector<256xf32>
    %12 = vector.shape_cast %11 : vector<256xf32> to vector<256x1xf32>
    %cst_8 = arith.constant 1.600000e+01 : f32
    %13 = vector.broadcast %cst_8 : f32 to vector<256x1xf32>
    %14 = arith.divf %12, %13 : vector<256x1xf32>
    %15 = vector.broadcast %7 : vector<256x1xf32> to vector<256x16xf32>
    %16 = arith.subf %1, %15 : vector<256x16xf32>
    %cst_9 = arith.constant 9.99999974E-6 : f32
    %17 = vector.broadcast %cst_9 : f32 to vector<256x1xf32>
    %18 = arith.addf %14, %17 : vector<256x1xf32>
    %19 = math.rsqrt %18 : vector<256x1xf32>
    %20 = vector.broadcast %19 : vector<256x1xf32> to vector<256x16xf32>
    %21 = arith.mulf %16, %20 : vector<256x16xf32>
    %22 = vector.broadcast %2 : vector<1x16xf32> to vector<256x16xf32>
    %23 = arith.mulf %21, %22 : vector<256x16xf32>
    %24 = vector.broadcast %3 : vector<1x16xf32> to vector<256x16xf32>
    %25 = arith.addf %23, %24 : vector<256x16xf32>
    %26 = arith.truncf %25 : vector<256x16xf32> to vector<256x16xbf16>
    %c0_10 = arith.constant 0 : index
    %c0_11 = arith.constant 0 : index
    %27 = vector.load %arg5[%c0_10, %c0_11] : memref<16x4xbf16, #tpu.memory_space<vmem>>, vector<16x4xbf16>
    %cst_12 = arith.constant dense<0.000000e+00> : vector<4x256xf32>
    %28 = tpu.matmul %27, %26, %cst_12 {dimension_numbers = #tpu.dot_dimension_numbers<[0], [1], [1], [0], [0, 1, 1, 0], [], []>} : vector<16x4xbf16>, vector<256x16xbf16>, vector<4x256xf32> -> vector<4x256xf32>
    %c0_13 = arith.constant 0 : index
    %c0_14 = arith.constant 0 : index
    %29 = vector.load %arg2[%c0_13, %c0_14] : memref<1x256xf32, #tpu.memory_space<vmem>>, vector<1x256xf32>
    %30 = vector.broadcast %29 : vector<1x256xf32> to vector<4x256xf32>
    %31 = arith.addf %28, %30 : vector<4x256xf32>
    %c0_15 = arith.constant 0 : index
    %c0_16 = arith.constant 0 : index
    %32 = vector.load %arg6[%c0_15, %c0_16] : memref<4x256xf32, #tpu.memory_space<vmem>>, vector<4x256xf32>
    tpu.vector_store %arg6[%c0_15, %c0_16], %31 {strides = array<i32>} : memref<4x256xf32, #tpu.memory_space<vmem>>, vector<4x256xf32>,
    return
  }
  func.func @transform_0(%arg0: i32) -> (i32, i32, i32) {
    %c0_i32 = arith.constant 0 : i32
    %c0_i32_0 = arith.constant 0 : i32
    %c0_i32_1 = arith.constant 0 : i32
    return %arg0, %c0_i32, %c0_i32_0 : i32, i32, i32
  }
  func.func @transform_1(%arg0: i32) -> (i32, i32) {
    %c0_i32 = arith.constant 0 : i32
    %c0_i32_0 = arith.constant 0 : i32
    return %c0_i32, %arg0 : i32, i32
  }
  func.func @transform_2(%arg0: i32) -> (i32, i32) {
    %c0_i32 = arith.constant 0 : i32
    %c0_i32_0 = arith.constant 0 : i32
    %c0_i32_1 = arith.constant 0 : i32
    return %c0_i32, %c0_i32_0 : i32, i32
  }
  func.func @transform_3(%arg0: i32) -> (i32, i32) {
    %c0_i32 = arith.constant 0 : i32
    %c0_i32_0 = arith.constant 0 : i32
    %c0_i32_1 = arith.constant 0 : i32
    return %c0_i32, %c0_i32_0 : i32, i32
  }
  func.func @transform_4(%arg0: i32) -> (i32, i32) {
    %c0_i32 = arith.constant 0 : i32
    %c0_i32_0 = arith.constant 0 : i32
    %c0_i32_1 = arith.constant 0 : i32
    return %c0_i32, %c0_i32_0 : i32, i32
  }
  func.func @transform_5(%arg0: i32) -> (i32, i32) {
    %c0_i32 = arith.constant 0 : i32
    %c0_i32_0 = arith.constant 0 : i32
    return %c0_i32, %arg0 : i32, i32
  }
}

</mosaic_0001>

<llo_original>
// kernel: tpu_custom_call.1
$region0: #{tpu_custom_call.1}
  #allocation0 [shape = 'u32[]', space=smem, size = 0x4, offset = 0x4, fixed_abs, tag = 'smem constant byte address 0x4 - core index']
  #allocation1 [shape = 'u32[144,128]{1,0:T(1,128)}', space=vmem, size = 0x12000, scoped, tag = 'internal scratch']
  %s0 = inlined_call_operand.hbm [shape: f32[16,16,16], index: 0, kind: input, shape index: {}]
  %s1 = inlined_call_operand.vmem [shape: f32[1,256], index: 1, kind: input, shape index: {}]
  %s2 = inlined_call_operand.vmem [shape: f32[1,16], index: 2, kind: input, shape index: {}]
  %s3 = inlined_call_operand.vmem [shape: f32[1,16], index: 3, kind: input, shape index: {}]
  %s4 = inlined_call_operand.vmem [shape: bf16[16,4], index: 4, kind: input, shape index: {}]
  %s5 = inlined_call_operand.hbm [shape: f32[4,256], index: 5, kind: output, shape index: {}]
  %s6 = sld [smem:[#allocation0]]
  $region34: #{tpu_custom_call.1} parent=0
    _
  %s8 = ssub.s32 1, %s6
  %s9 = scalar_select 0, %s8, %s6
  $region1: #{tpu_custom_call.1} parent=0
    #allocation2 [shape = 'u8[131072]{0}', space=vmem, size = 0x20000, scoped, tag = 'input window, operand 0, single buffered']
    #allocation3 [shape = 's32[1]{0}', space=sflag, size = 0x4, scoped, tag = 'scoped memory for tpu_custom_call.1']
    #allocation4 [shape = 's32[1]{0}', space=sflag, size = 0x4, scoped, tag = 'scoped memory for tpu_custom_call.1']
    #allocation5 [shape = 'u8[4096]{0}', space=vmem, size = 0x1000, scoped, tag = 'output window, operand 0, single buffered']
    %10 = vsyncpa [#allocation3], 0
    %11 = vsyncpa [#allocation4], 0
    // Predicated region
    $region2: #{tpu_custom_call.1} parent=1 // pred_check
      _
    $region3: #{tpu_custom_call.1} parent=1 // pred_check_branch
      %13 = sbr.rel (0) target = $region5
    $region4: #{tpu_custom_call.1} parent=1 // pred_region
      %s15 = ssub.s32 4096, 4096
      %16 = vsyncadd [#allocation3], %s15
      %s17 = sshll.u32 [#allocation2], 4
      %s18 = int_to_ptr.vmem [resolvable:$true] %s17
      %23 = dma.hbm_to_vmem [thread:$0]  %s0, 4096, %s18, [#allocation3], 128, 128, 8
    $region5: #{tpu_custom_call.1} parent=1 // pred_fallthru
      _
    // Predicated region
    $region6: #{tpu_custom_call.1} parent=1 // pred_check
      _
    $region7: #{tpu_custom_call.1} parent=1 // pred_check_branch
      %25 = sbr.rel (0) target = $region9
    $region8: #{tpu_custom_call.1} parent=1 // pred_region
      _
    $region9: #{tpu_custom_call.1} parent=1 // pred_fallthru
      _
    // Predicated region
    $region10: #{tpu_custom_call.1} parent=1 // pred_check
      _
    $region11: #{tpu_custom_call.1} parent=1 // pred_check_branch
      %27 = sbr.rel (0) target = $region13
    $region12: #{tpu_custom_call.1} parent=1 // pred_region
      _
    $region13: #{tpu_custom_call.1} parent=1 // pred_fallthru
      _
    // Predicated region
    $region14: #{tpu_custom_call.1} parent=1 // pred_check
      _
    $region15: #{tpu_custom_call.1} parent=1 // pred_check_branch
      %29 = sbr.rel (0) target = $region17
    $region16: #{tpu_custom_call.1} parent=1 // pred_region
      _
    $region17: #{tpu_custom_call.1} parent=1 // pred_fallthru
      _
    // Predicated region
    $region18: #{tpu_custom_call.1} parent=1 // pred_check
      _
    $region19: #{tpu_custom_call.1} parent=1 // pred_check_branch
      %31 = sbr.rel (0) target = $region21
    $region20: #{tpu_custom_call.1} parent=1 // pred_region
      _
    $region21: #{tpu_custom_call.1} parent=1 // pred_fallthru
      _
    // Predicated region
    $region22: #{tpu_custom_call.1} parent=1 // pred_check
      _
    $region23: #{tpu_custom_call.1} parent=1 // pred_check_branch
      %33 = sbr.rel (0) target = $region25
    $region24: #{tpu_custom_call.1} parent=1 // pred_region
      %34 = dma.done [#allocation3], 4096
    $region25: #{tpu_custom_call.1} parent=1 // pred_fallthru
      _
    %v36 = vld [vmem:[#allocation2] sm:$0xff]
    %v37 = vld [vmem:[#allocation2 + $0x8] sm:$0xff]
    %v38 = vld [vmem:[#allocation2 + $0x10] sm:$0xff]
    %v39 = vld [vmem:[#allocation2 + $0x18] sm:$0xff]
    %v40 = vld [vmem:[#allocation2 + $0x20] sm:$0xff]
    %v41 = vld [vmem:[#allocation2 + $0x28] sm:$0xff]
    %v42 = vld [vmem:[#allocation2 + $0x30] sm:$0xff]
    %v43 = vld [vmem:[#allocation2 + $0x38] sm:$0xff]
    %v44 = vld [vmem:[#allocation2 + $0x40] sm:$0xff]
    %v45 = vld [vmem:[#allocation2 + $0x48] sm:$0xff]
    %v46 = vld [vmem:[#allocation2 + $0x50] sm:$0xff]
    %v47 = vld [vmem:[#allocation2 + $0x58] sm:$0xff]
    %v48 = vld [vmem:[#allocation2 + $0x60] sm:$0xff]
    %v49 = vld [vmem:[#allocation2 + $0x68] sm:$0xff]
    %v50 = vld [vmem:[#allocation2 + $0x70] sm:$0xff]
    %v51 = vld [vmem:[#allocation2 + $0x78] sm:$0xff]
    %v52 = vld [vmem:[#allocation2 + $0x80] sm:$0xff]
    %v53 = vld [vmem:[#allocation2 + $0x88] sm:$0xff]
    %v54 = vld [vmem:[#allocation2 + $0x90] sm:$0xff]
    %v55 = vld [vmem:[#allocation2 + $0x98] sm:$0xff]
    %v56 = vld [vmem:[#allocation2 + $0xa0] sm:$0xff]
    %v57 = vld [vmem:[#allocation2 + $0xa8] sm:$0xff]
    %v58 = vld [vmem:[#allocation2 + $0xb0] sm:$0xff]
    %v59 = vld [vmem:[#allocation2 + $0xb8] sm:$0xff]
    %v60 = vld [vmem:[#allocation2 + $0xc0] sm:$0xff]
    %v61 = vld [vmem:[#allocation2 + $0xc8] sm:$0xff]
    %v62 = vld [vmem:[#allocation2 + $0xd0] sm:$0xff]
    %v63 = vld [vmem:[#allocation2 + $0xd8] sm:$0xff]
    %v64 = vld [vmem:[#allocation2 + $0xe0] sm:$0xff]
    %v65 = vld [vmem:[#allocation2 + $0xe8] sm:$0xff]
    %v66 = vld [vmem:[#allocation2 + $0xf0] sm:$0xff]
    %v67 = vld [vmem:[#allocation2 + $0xf8] sm:$0xff]
    %v68 = vld [vmem:[%s2] sm:$0x1]
    %v69 = vld [vmem:[%s3] sm:$0x1]
    %vm70 = vcmask 130048
    %v71 = vsel %vm70, %v36, 0.0
    %72 = vadd.xlane.f32.xlu0 %v71
    %v73 = vpop.xlane.xlu0 %72
    %v74 = vsel %vm70, %v37, 0.0
    %75 = vadd.xlane.f32.xlu0 %v74
    %v76 = vpop.xlane.xlu0 %75
    %v77 = vsel %vm70, %v38, 0.0
    %78 = vadd.xlane.f32.xlu0 %v77
    %v79 = vpop.xlane.xlu0 %78
    %v80 = vsel %vm70, %v39, 0.0
    %81 = vadd.xlane.f32.xlu0 %v80
    %v82 = vpop.xlane.xlu0 %81
    %v83 = vsel %vm70, %v40, 0.0
    %84 = vadd.xlane.f32.xlu0 %v83
    %v85 = vpop.xlane.xlu0 %84
    %v86 = vsel %vm70, %v41, 0.0
    %87 = vadd.xlane.f32.xlu0 %v86
    %v88 = vpop.xlane.xlu0 %87
    %v89 = vsel %vm70, %v42, 0.0
    %90 = vadd.xlane.f32.xlu0 %v89
    %v91 = vpop.xlane.xlu0 %90
    %v92 = vsel %vm70, %v43, 0.0
    %93 = vadd.xlane.f32.xlu0 %v92
    %v94 = vpop.xlane.xlu0 %93
    %v95 = vsel %vm70, %v44, 0.0
    %96 = vadd.xlane.f32.xlu0 %v95
    %v97 = vpop.xlane.xlu0 %96
    %v98 = vsel %vm70, %v45, 0.0
    %99 = vadd.xlane.f32.xlu0 %v98
    %v100 = vpop.xlane.xlu0 %99
    %v101 = vsel %vm70, %v46, 0.0
    %102 = vadd.xlane.f32.xlu0 %v101
    %v103 = vpop.xlane.xlu0 %102
    %v104 = vsel %vm70, %v47, 0.0
    %105 = vadd.xlane.f32.xlu0 %v104
    %v106 = vpop.xlane.xlu0 %105
    %v107 = vsel %vm70, %v48, 0.0
    %108 = vadd.xlane.f32.xlu0 %v107
    %v109 = vpop.xlane.xlu0 %108
    %v110 = vsel %vm70, %v49, 0.0
    %111 = vadd.xlane.f32.xlu0 %v110
    %v112 = vpop.xlane.xlu0 %111
    %v113 = vsel %vm70, %v50, 0.0
    %114 = vadd.xlane.f32.xlu0 %v113
    %v115 = vpop.xlane.xlu0 %114
    %v116 = vsel %vm70, %v51, 0.0
    %117 = vadd.xlane.f32.xlu0 %v116
    %v118 = vpop.xlane.xlu0 %117
    %v119 = vsel %vm70, %v52, 0.0
    %120 = vadd.xlane.f32.xlu0 %v119
    %v121 = vpop.xlane.xlu0 %120
    %v122 = vsel %vm70, %v53, 0.0
    %123 = vadd.xlane.f32.xlu0 %v122
    %v124 = vpop.xlane.xlu0 %123
    %v125 = vsel %vm70, %v54, 0.0
    %126 = vadd.xlane.f32.xlu0 %v125
    %v127 = vpop.xlane.xlu0 %126
    %v128 = vsel %vm70, %v55, 0.0
    %129 = vadd.xlane.f32.xlu0 %v128
    %v130 = vpop.xlane.xlu0 %129
    %v131 = vsel %vm70, %v56, 0.0
    %132 = vadd.xlane.f32.xlu0 %v131
    %v133 = vpop.xlane.xlu0 %132
    %v134 = vsel %vm70, %v57, 0.0
    %135 = vadd.xlane.f32.xlu0 %v134
    %v136 = vpop.xlane.xlu0 %135
    %v137 = vsel %vm70, %v58, 0.0
    %138 = vadd.xlane.f32.xlu0 %v137
    %v139 = vpop.xlane.xlu0 %138
    %v140 = vsel %vm70, %v59, 0.0
    %141 = vadd.xlane.f32.xlu0 %v140
    %v142 = vpop.xlane.xlu0 %141
    %v143 = vsel %vm70, %v60, 0.0
    %144 = vadd.xlane.f32.xlu0 %v143
    %v145 = vpop.xlane.xlu0 %144
    %v146 = vsel %vm70, %v61, 0.0
    %147 = vadd.xlane.f32.xlu0 %v146
    %v148 = vpop.xlane.xlu0 %147
    %v149 = vsel %vm70, %v62, 0.0
    %150 = vadd.xlane.f32.xlu0 %v149
    %v151 = vpop.xlane.xlu0 %150
    %v152 = vsel %vm70, %v63, 0.0
    %153 = vadd.xlane.f32.xlu0 %v152
    %v154 = vpop.xlane.xlu0 %153
    %v155 = vsel %vm70, %v64, 0.0
    %156 = vadd.xlane.f32.xlu0 %v155
    %v157 = vpop.xlane.xlu0 %156
    %v158 = vsel %vm70, %v65, 0.0
    %159 = vadd.xlane.f32.xlu0 %v158
    %v160 = vpop.xlane.xlu0 %159
    %v161 = vsel %vm70, %v66, 0.0
    %162 = vadd.xlane.f32.xlu0 %v161
    %v163 = vpop.xlane.xlu0 %162
    %v164 = vsel %vm70, %v67, 0.0
    %165 = vadd.xlane.f32.xlu0 %v164
    %v166 = vpop.xlane.xlu0 %165
    %v167 = vrcp.pop 16.0
    %v168 = vmul.f32 %v73, %v167
    %v169 = vmul.f32 %v76, %v167
    %v170 = vmul.f32 %v79, %v167
    %v171 = vmul.f32 %v82, %v167
    %v172 = vmul.f32 %v85, %v167
    %v173 = vmul.f32 %v88, %v167
    %v174 = vmul.f32 %v91, %v167
    %v175 = vmul.f32 %v94, %v167
    %v176 = vmul.f32 %v97, %v167
    %v177 = vmul.f32 %v100, %v167
    %v178 = vmul.f32 %v103, %v167
    %v179 = vmul.f32 %v106, %v167
    %v180 = vmul.f32 %v109, %v167
    %v181 = vmul.f32 %v112, %v167
    %v182 = vmul.f32 %v115, %v167
    %v183 = vmul.f32 %v118, %v167
    %v184 = vmul.f32 %v121, %v167
    %v185 = vmul.f32 %v124, %v167
    %v186 = vmul.f32 %v127, %v167
    %v187 = vmul.f32 %v130, %v167
    %v188 = vmul.f32 %v133, %v167
    %v189 = vmul.f32 %v136, %v167
    %v190 = vmul.f32 %v139, %v167
    %v191 = vmul.f32 %v142, %v167
    %v192 = vmul.f32 %v145, %v167
    %v193 = vmul.f32 %v148, %v167
    %v194 = vmul.f32 %v151, %v167
    %v195 = vmul.f32 %v154, %v167
    %v196 = vmul.f32 %v157, %v167
    %v197 = vmul.f32 %v160, %v167
    %v198 = vmul.f32 %v163, %v167
    %v199 = vmul.f32 %v166, %v167
    %v200 = vsub.f32 %v36, %v168
    %v201 = vsub.f32 %v37, %v169
    %v202 = vsub.f32 %v38, %v170
    %v203 = vsub.f32 %v39, %v171
    %v204 = vsub.f32 %v40, %v172
    %v205 = vsub.f32 %v41, %v173
    %v206 = vsub.f32 %v42, %v174
    %v207 = vsub.f32 %v43, %v175
    %v208 = vsub.f32 %v44, %v176
    %v209 = vsub.f32 %v45, %v177
    %v210 = vsub.f32 %v46, %v178
    %v211 = vsub.f32 %v47, %v179
    %v212 = vsub.f32 %v48, %v180
    %v213 = vsub.f32 %v49, %v181
    %v214 = vsub.f32 %v50, %v182
    %v215 = vsub.f32 %v51, %v183
    %v216 = vsub.f32 %v52, %v184
    %v217 = vsub.f32 %v53, %v185
    %v218 = vsub.f32 %v54, %v186
    %v219 = vsub.f32 %v55, %v187
    %v220 = vsub.f32 %v56, %v188
    %v221 = vsub.f32 %v57, %v189
    %v222 = vsub.f32 %v58, %v190
    %v223 = vsub.f32 %v59, %v191
    %v224 = vsub.f32 %v60, %v192
    %v225 = vsub.f32 %v61, %v193
    %v226 = vsub.f32 %v62, %v194
    %v227 = vsub.f32 %v63, %v195
    %v228 = vsub.f32 %v64, %v196
    %v229 = vsub.f32 %v65, %v197
    %v230 = vsub.f32 %v66, %v198
    %v231 = vsub.f32 %v67, %v199
    %v232 = vmul.f32 %v200, %v200
    %v233 = vmul.f32 %v201, %v201
    %v234 = vmul.f32 %v202, %v202
    %v235 = vmul.f32 %v203, %v203
    %v236 = vmul.f32 %v204, %v204
    %v237 = vmul.f32 %v205, %v205
    %v238 = vmul.f32 %v206, %v206
    %v239 = vmul.f32 %v207, %v207
    %v240 = vmul.f32 %v208, %v208
    %v241 = vmul.f32 %v209, %v209
    %v242 = vmul.f32 %v210, %v210
    %v243 = vmul.f32 %v211, %v211
    %v244 = vmul.f32 %v212, %v212
    %v245 = vmul.f32 %v213, %v213
    %v246 = vmul.f32 %v214, %v214
    %v247 = vmul.f32 %v215, %v215
    %v248 = vmul.f32 %v216, %v216
    %v249 = vmul.f32 %v217, %v217
    %v250 = vmul.f32 %v218, %v218
    %v251 = vmul.f32 %v219, %v219
    %v252 = vmul.f32 %v220, %v220
    %v253 = vmul.f32 %v221, %v221
    %v254 = vmul.f32 %v222, %v222
    %v255 = vmul.f32 %v223, %v223
    %v256 = vmul.f32 %v224, %v224
    %v257 = vmul.f32 %v225, %v225
    %v258 = vmul.f32 %v226, %v226
    %v259 = vmul.f32 %v227, %v227
    %v260 = vmul.f32 %v228, %v228
    %v261 = vmul.f32 %v229, %v229
    %v262 = vmul.f32 %v230, %v230
    %v263 = vmul.f32 %v231, %v231
    %v264 = vsel %vm70, %v232, 0.0
    %265 = vadd.xlane.f32.xlu0 %v264
    %v266 = vpop.xlane.xlu0 %265
    %v267 = vsel %vm70, %v233, 0.0
    %268 = vadd.xlane.f32.xlu0 %v267
    %v269 = vpop.xlane.xlu0 %268
    %v270 = vsel %vm70, %v234, 0.0
    %271 = vadd.xlane.f32.xlu0 %v270
    %v272 = vpop.xlane.xlu0 %271
    %v273 = vsel %vm70, %v235, 0.0
    %274 = vadd.xlane.f32.xlu0 %v273
    %v275 = vpop.xlane.xlu0 %274
    %v276 = vsel %vm70, %v236, 0.0
    %277 = vadd.xlane.f32.xlu0 %v276
    %v278 = vpop.xlane.xlu0 %277
    %v279 = vsel %vm70, %v237, 0.0
    %280 = vadd.xlane.f32.xlu0 %v279
    %v281 = vpop.xlane.xlu0 %280
    %v282 = vsel %vm70, %v238, 0.0
    %283 = vadd.xlane.f32.xlu0 %v282
    %v284 = vpop.xlane.xlu0 %283
    %v285 = vsel %vm70, %v239, 0.0
    %286 = vadd.xlane.f32.xlu0 %v285
    %v287 = vpop.xlane.xlu0 %286
    %v288 = vsel %vm70, %v240, 0.0
    %289 = vadd.xlane.f32.xlu0 %v288
    %v290 = vpop.xlane.xlu0 %289
    %v291 = vsel %vm70, %v241, 0.0
    %292 = vadd.xlane.f32.xlu0 %v291
    %v293 = vpop.xlane.xlu0 %292
    %v294 = vsel %vm70, %v242, 0.0
    %295 = vadd.xlane.f32.xlu0 %v294
    %v296 = vpop.xlane.xlu0 %295
    %v297 = vsel %vm70, %v243, 0.0
    %298 = vadd.xlane.f32.xlu0 %v297
    %v299 = vpop.xlane.xlu0 %298
    %v300 = vsel %vm70, %v244, 0.0
    %301 = vadd.xlane.f32.xlu0 %v300
    %v302 = vpop.xlane.xlu0 %301
    %v303 = vsel %vm70, %v245, 0.0
    %304 = vadd.xlane.f32.xlu0 %v303
    %v305 = vpop.xlane.xlu0 %304
    %v306 = vsel %vm70, %v246, 0.0
    %307 = vadd.xlane.f32.xlu0 %v306
    %v308 = vpop.xlane.xlu0 %307
    %v309 = vsel %vm70, %v247, 0.0
    %310 = vadd.xlane.f32.xlu0 %v309
    %v311 = vpop.xlane.xlu0 %310
    %v312 = vsel %vm70, %v248, 0.0
    %313 = vadd.xlane.f32.xlu0 %v312
    %v314 = vpop.xlane.xlu0 %313
    %v315 = vsel %vm70, %v249, 0.0
    %316 = vadd.xlane.f32.xlu0 %v315
    %v317 = vpop.xlane.xlu0 %316
    %v318 = vsel %vm70, %v250, 0.0
    %319 = vadd.xlane.f32.xlu0 %v318
    %v320 = vpop.xlane.xlu0 %319
    %v321 = vsel %vm70, %v251, 0.0
    %322 = vadd.xlane.f32.xlu0 %v321
    %v323 = vpop.xlane.xlu0 %322
    %v324 = vsel %vm70, %v252, 0.0
    %325 = vadd.xlane.f32.xlu0 %v324
    %v326 = vpop.xlane.xlu0 %325
    %v327 = vsel %vm70, %v253, 0.0
    %328 = vadd.xlane.f32.xlu0 %v327
    %v329 = vpop.xlane.xlu0 %328
    %v330 = vsel %vm70, %v254, 0.0
    %331 = vadd.xlane.f32.xlu0 %v330
    %v332 = vpop.xlane.xlu0 %331
    %v333 = vsel %vm70, %v255, 0.0
    %334 = vadd.xlane.f32.xlu0 %v333
    %v335 = vpop.xlane.xlu0 %334
    %v336 = vsel %vm70, %v256, 0.0
    %337 = vadd.xlane.f32.xlu0 %v336
    %v338 = vpop.xlane.xlu0 %337
    %v339 = vsel %vm70, %v257, 0.0
    %340 = vadd.xlane.f32.xlu0 %v339
    %v341 = vpop.xlane.xlu0 %340
    %v342 = vsel %vm70, %v258, 0.0
    %343 = vadd.xlane.f32.xlu0 %v342
    %v344 = vpop.xlane.xlu0 %343
    %v345 = vsel %vm70, %v259, 0.0
    %346 = vadd.xlane.f32.xlu0 %v345
    %v347 = vpop.xlane.xlu0 %346
    %v348 = vsel %vm70, %v260, 0.0
    %349 = vadd.xlane.f32.xlu0 %v348
    %v350 = vpop.xlane.xlu0 %349
    %v351 = vsel %vm70, %v261, 0.0
    %352 = vadd.xlane.f32.xlu0 %v351
    %v353 = vpop.xlane.xlu0 %352
    %v354 = vsel %vm70, %v262, 0.0
    %355 = vadd.xlane.f32.xlu0 %v354
    %v356 = vpop.xlane.xlu0 %355
    %v357 = vsel %vm70, %v263, 0.0
    %358 = vadd.xlane.f32.xlu0 %v357
    %v359 = vpop.xlane.xlu0 %358
    %v360 = vmul.f32 %v266, %v167
    %v361 = vmul.f32 %v269, %v167
    %v362 = vmul.f32 %v272, %v167
    %v363 = vmul.f32 %v275, %v167
    %v364 = vmul.f32 %v278, %v167
    %v365 = vmul.f32 %v281, %v167
    %v366 = vmul.f32 %v284, %v167
    %v367 = vmul.f32 %v287, %v167
    %v368 = vmul.f32 %v290, %v167
    %v369 = vmul.f32 %v293, %v167
    %v370 = vmul.f32 %v296, %v167
    %v371 = vmul.f32 %v299, %v167
    %v372 = vmul.f32 %v302, %v167
    %v373 = vmul.f32 %v305, %v167
    %v374 = vmul.f32 %v308, %v167
    %v375 = vmul.f32 %v311, %v167
    %v376 = vmul.f32 %v314, %v167
    %v377 = vmul.f32 %v317, %v167
    %v378 = vmul.f32 %v320, %v167
    %v379 = vmul.f32 %v323, %v167
    %v380 = vmul.f32 %v326, %v167
    %v381 = vmul.f32 %v329, %v167
    %v382 = vmul.f32 %v332, %v167
    %v383 = vmul.f32 %v335, %v167
    %v384 = vmul.f32 %v338, %v167
    %v385 = vmul.f32 %v341, %v167
    %v386 = vmul.f32 %v344, %v167
    %v387 = vmul.f32 %v347, %v167
    %v388 = vmul.f32 %v350, %v167
    %v389 = vmul.f32 %v353, %v167
    %v390 = vmul.f32 %v356, %v167
    %v391 = vmul.f32 %v359, %v167
    %v392 = vadd.f32 %v360, 1e-05
    %v393 = vadd.f32 %v361, 1e-05
    %v394 = vadd.f32 %v362, 1e-05
    %v395 = vadd.f32 %v363, 1e-05
    %v396 = vadd.f32 %v364, 1e-05
    %v397 = vadd.f32 %v365, 1e-05
    %v398 = vadd.f32 %v366, 1e-05
    %v399 = vadd.f32 %v367, 1e-05
    %v400 = vadd.f32 %v368, 1e-05
    %v401 = vadd.f32 %v369, 1e-05
    %v402 = vadd.f32 %v370, 1e-05
    %v403 = vadd.f32 %v371, 1e-05
    %v404 = vadd.f32 %v372, 1e-05
    %v405 = vadd.f32 %v373, 1e-05
    %v406 = vadd.f32 %v374, 1e-05
    %v407 = vadd.f32 %v375, 1e-05
    %v408 = vadd.f32 %v376, 1e-05
    %v409 = vadd.f32 %v377, 1e-05
    %v410 = vadd.f32 %v378, 1e-05
    %v411 = vadd.f32 %v379, 1e-05
    %v412 = vadd.f32 %v380, 1e-05
    %v413 = vadd.f32 %v381, 1e-05
    %v414 = vadd.f32 %v382, 1e-05
    %v415 = vadd.f32 %v383, 1e-05
    %v416 = vadd.f32 %v384, 1e-05
    %v417 = vadd.f32 %v385, 1e-05
    %v418 = vadd.f32 %v386, 1e-05
    %v419 = vadd.f32 %v387, 1e-05
    %v420 = vadd.f32 %v388, 1e-05
    %v421 = vadd.f32 %v389, 1e-05
    %v422 = vadd.f32 %v390, 1e-05
    %v423 = vadd.f32 %v391, 1e-05
    %v424 = vrsqrt.pop %v392
    %v425 = vrsqrt.pop %v393
    %v426 = vrsqrt.pop %v394
    %v427 = vrsqrt.pop %v395
    %v428 = vrsqrt.pop %v396
    %v429 = vrsqrt.pop %v397
    %v430 = vrsqrt.pop %v398
    %v431 = vrsqrt.pop %v399
    %v432 = vrsqrt.pop %v400
    %v433 = vrsqrt.pop %v401
    %v434 = vrsqrt.pop %v402
    %v435 = vrsqrt.pop %v403
    %v436 = vrsqrt.pop %v404
    %v437 = vrsqrt.pop %v405
    %v438 = vrsqrt.pop %v406
    %v439 = vrsqrt.pop %v407
    %v440 = vrsqrt.pop %v408
    %v441 = vrsqrt.pop %v409
    %v442 = vrsqrt.pop %v410
    %v443 = vrsqrt.pop %v411
    %v444 = vrsqrt.pop %v412
    %v445 = vrsqrt.pop %v413
    %v446 = vrsqrt.pop %v414
    %v447 = vrsqrt.pop %v415
    %v448 = vrsqrt.pop %v416
    %v449 = vrsqrt.pop %v417
    %v450 = vrsqrt.pop %v418
    %v451 = vrsqrt.pop %v419
    %v452 = vrsqrt.pop %v420
    %v453 = vrsqrt.pop %v421
    %v454 = vrsqrt.pop %v422
    %v455 = vrsqrt.pop %v423
    %v456 = vmul.f32 %v200, %v424
    %v457 = vmul.f32 %v201, %v425
    %v458 = vmul.f32 %v202, %v426
    %v459 = vmul.f32 %v203, %v427
    %v460 = vmul.f32 %v204, %v428
    %v461 = vmul.f32 %v205, %v429
    %v462 = vmul.f32 %v206, %v430
    %v463 = vmul.f32 %v207, %v431
    %v464 = vmul.f32 %v208, %v432
    %v465 = vmul.f32 %v209, %v433
    %v466 = vmul.f32 %v210, %v434
    %v467 = vmul.f32 %v211, %v435
    %v468 = vmul.f32 %v212, %v436
    %v469 = vmul.f32 %v213, %v437
    %v470 = vmul.f32 %v214, %v438
    %v471 = vmul.f32 %v215, %v439
    %v472 = vmul.f32 %v216, %v440
    %v473 = vmul.f32 %v217, %v441
    %v474 = vmul.f32 %v218, %v442
    %v475 = vmul.f32 %v219, %v443
    %v476 = vmul.f32 %v220, %v444
    %v477 = vmul.f32 %v221, %v445
    %v478 = vmul.f32 %v222, %v446
    %v479 = vmul.f32 %v223, %v447
    %v480 = vmul.f32 %v224, %v448
    %v481 = vmul.f32 %v225, %v449
    %v482 = vmul.f32 %v226, %v450
    %v483 = vmul.f32 %v227, %v451
    %v484 = vmul.f32 %v228, %v452
    %v485 = vmul.f32 %v229, %v453
    %v486 = vmul.f32 %v230, %v454
    %v487 = vmul.f32 %v231, %v455
    %v489 = vlaneseq
    %v490 = vshrl.u32 %v489, 7
    %v491 = vsub.s32 0, %v490
    %v492 = vrot.slane %v68, %v491
    %v494 = vmul.f32 %v456, %v492
    %v495 = vmul.f32 %v457, %v492
    %v496 = vmul.f32 %v458, %v492
    %v497 = vmul.f32 %v459, %v492
    %v498 = vmul.f32 %v460, %v492
    %v499 = vmul.f32 %v461, %v492
    %v500 = vmul.f32 %v462, %v492
    %v501 = vmul.f32 %v463, %v492
    %v502 = vmul.f32 %v464, %v492
    %v503 = vmul.f32 %v465, %v492
    %v504 = vmul.f32 %v466, %v492
    %v505 = vmul.f32 %v467, %v492
    %v506 = vmul.f32 %v468, %v492
    %v507 = vmul.f32 %v469, %v492
    %v508 = vmul.f32 %v470, %v492
    %v509 = vmul.f32 %v471, %v492
    %v510 = vmul.f32 %v472, %v492
    %v511 = vmul.f32 %v473, %v492
    %v512 = vmul.f32 %v474, %v492
    %v513 = vmul.f32 %v475, %v492
    %v514 = vmul.f32 %v476, %v492
    %v515 = vmul.f32 %v477, %v492
    %v516 = vmul.f32 %v478, %v492
    %v517 = vmul.f32 %v479, %v492
    %v518 = vmul.f32 %v480, %v492
    %v519 = vmul.f32 %v481, %v492
    %v520 = vmul.f32 %v482, %v492
    %v521 = vmul.f32 %v483, %v492
    %v522 = vmul.f32 %v484, %v492
    %v523 = vmul.f32 %v485, %v492
    %v524 = vmul.f32 %v486, %v492
    %v525 = vmul.f32 %v487, %v492
    %v527 = vlaneseq
    %v528 = vshrl.u32 %v527, 7
    %v529 = vsub.s32 0, %v528
    %v530 = vrot.slane %v69, %v529
    %v532 = vadd.f32 %v494, %v530
    %v533 = vadd.f32 %v495, %v530
    %v534 = vadd.f32 %v496, %v530
    %v535 = vadd.f32 %v497, %v530
    %v536 = vadd.f32 %v498, %v530
    %v537 = vadd.f32 %v499, %v530
    %v538 = vadd.f32 %v500, %v530
    %v539 = vadd.f32 %v501, %v530
    %v540 = vadd.f32 %v502, %v530
    %v541 = vadd.f32 %v503, %v530
    %v542 = vadd.f32 %v504, %v530
    %v543 = vadd.f32 %v505, %v530
    %v544 = vadd.f32 %v506, %v530
    %v545 = vadd.f32 %v507, %v530
    %v546 = vadd.f32 %v508, %v530
    %v547 = vadd.f32 %v509, %v530
    %v548 = vadd.f32 %v510, %v530
    %v549 = vadd.f32 %v511, %v530
    %v550 = vadd.f32 %v512, %v530
    %v551 = vadd.f32 %v513, %v530
    %v552 = vadd.f32 %v514, %v530
    %v553 = vadd.f32 %v515, %v530
    %v554 = vadd.f32 %v516, %v530
    %v555 = vadd.f32 %v517, %v530
    %v556 = vadd.f32 %v518, %v530
    %v557 = vadd.f32 %v519, %v530
    %v558 = vadd.f32 %v520, %v530
    %v559 = vadd.f32 %v521, %v530
    %v560 = vadd.f32 %v522, %v530
    %v561 = vadd.f32 %v523, %v530
    %v562 = vadd.f32 %v524, %v530
    %v563 = vadd.f32 %v525, %v530
    %v564 = vpack.c.bf16 %v533, %v532
    %v565 = vpack.c.bf16 %v535, %v534
    %v566 = vpack.c.bf16 %v537, %v536
    %v567 = vpack.c.bf16 %v539, %v538
    %v568 = vpack.c.bf16 %v541, %v540
    %v569 = vpack.c.bf16 %v543, %v542
    %v570 = vpack.c.bf16 %v545, %v544
    %v571 = vpack.c.bf16 %v547, %v546
    %v572 = vpack.c.bf16 %v549, %v548
    %v573 = vpack.c.bf16 %v551, %v550
    %v574 = vpack.c.bf16 %v553, %v552
    %v575 = vpack.c.bf16 %v555, %v554
    %v576 = vpack.c.bf16 %v557, %v556
    %v577 = vpack.c.bf16 %v559, %v558
    %v578 = vpack.c.bf16 %v561, %v560
    %v579 = vpack.c.bf16 %v563, %v562
    %v580 = vld [vmem:[%s4] sm:$0xf]
    %v581 = vld [vmem:[%s4 + $0x4] sm:$0xf]
    %v582 = vld [vmem:[%s1] sm:$0x3]
    %v584 = vlaneseq
    %v585 = vshrl.u32 %v584, 7
    %v586 = vsub.s32 0, %v585
    %v587 = vrot.slane %v582, %v586
    %v588 = vlaneseq
    %v589 = vshrl.u32 %v588, 7
    %v590 = vsub.s32 1, %v589
    %v591 = vrot.slane %v582, %v590
    %v596 = vunpack.c.l.b16 %v580
    %v597 = vunpack.c.l.b16 %v581
    %v598 = vpack.c.b16 %v597, %v596
    %600 = vxpose.xlu0.c.b16.start [1/8] %v598, 128
    %601 = vxpose.xlu0.c.b16.cont [2/8] 0, 128
    %602 = vxpose.xlu0.c.b16.cont [3/8] 0, 128
    %603 = vxpose.xlu0.c.b16.cont [4/8] 0, 128
    %604 = vxpose.xlu0.c.b16.cont [5/8] 0, 128
    %605 = vxpose.xlu0.c.b16.cont [6/8] 0, 128
    %606 = vxpose.xlu0.c.b16.cont [7/8] 0, 128
    %607 = vxpose.xlu0.c.b16.end [8/8] 0, 128
    %v608 = vpop.trf.xlu0
    %v609 = vpop.trf.xlu0
    %v610 = vpop.trf.xlu0
    %v611 = vpop.trf.xlu0
    %v612 = vpop.trf.xlu0
    %v613 = vpop.trf.xlu0
    %v614 = vpop.trf.xlu0
    %v615 = vpop.trf.xlu0
    %v617 = vsel %vm70, %v608, 0
    %v620 = vsel %vm70, %v564, 0
    %v623 = vsel %vm70, %v565, 0
    %v626 = vsel %vm70, %v566, 0
    %v629 = vsel %vm70, %v567, 0
    %v632 = vsel %vm70, %v568, 0
    %v635 = vsel %vm70, %v569, 0
    %v638 = vsel %vm70, %v570, 0
    %v641 = vsel %vm70, %v571, 0
    %v644 = vsel %vm70, %v572, 0
    %v647 = vsel %vm70, %v573, 0
    %v650 = vsel %vm70, %v574, 0
    %v653 = vsel %vm70, %v575, 0
    %v656 = vsel %vm70, %v576, 0
    %v659 = vsel %vm70, %v577, 0
    %v662 = vsel %vm70, %v578, 0
    %v665 = vsel %vm70, %v579, 0
    %667 = vmatprep.subr.bf16.mxu0 0
    %668 = vmatpush1.bf16.xpose.msra.mxu0 %v620
    %669 = vmatprep.subr.bf16.mxu0 0
    %670 = vmatpush1.bf16.xpose.msra.mxu0 %v623
    %671 = vmatprep.subr.bf16.mxu0 0
    %672 = vmatpush1.bf16.xpose.msra.mxu0 %v626
    %673 = vmatprep.subr.bf16.mxu0 0
    %674 = vmatpush1.bf16.xpose.msra.mxu0 %v629
    %675 = vmatprep.subr.bf16.mxu0 0
    %676 = vmatpush1.bf16.xpose.msra.mxu0 %v632
    %677 = vmatprep.subr.bf16.mxu0 0
    %678 = vmatpush1.bf16.xpose.msra.mxu0 %v635
    %679 = vmatprep.subr.bf16.mxu0 0
    %680 = vmatpush1.bf16.xpose.msra.mxu0 %v638
    %681 = vmatprep.subr.bf16.mxu0 0
    %682 = vmatpush1.bf16.xpose.msra.mxu0 %v641
    %683 = vmatprep.subr.bf16.mxu0 0
    %684 = vmatpush1.bf16.xpose.msra.mxu0 %v644
    %685 = vmatprep.subr.bf16.mxu0 0
    %686 = vmatpush1.bf16.xpose.msra.mxu0 %v647
    %687 = vmatprep.subr.bf16.mxu0 0
    %688 = vmatpush1.bf16.xpose.msra.mxu0 %v650
    %689 = vmatprep.subr.bf16.mxu0 0
    %690 = vmatpush1.bf16.xpose.msra.mxu0 %v653
    %691 = vmatprep.subr.bf16.mxu0 0
    %692 = vmatpush1.bf16.xpose.msra.mxu0 %v656
    %693 = vmatprep.subr.bf16.mxu0 0
    %694 = vmatpush1.bf16.xpose.msra.mxu0 %v659
    %695 = vmatprep.subr.bf16.mxu0 0
    %696 = vmatpush1.bf16.xpose.msra.mxu0 %v662
    %697 = vmatprep.subr.bf16.mxu0 0
    %698 = vmatpush1.bf16.xpose.msra.mxu0 %v665
    %699 = vmatprep.mubr.bf16.mxu0 0
    %700 = vmatmul.mubr.bf16.gmra.mrb[0].mxu0 %v617
    %v701 = vpop.f32.mrb[0].mxu0
    %v702 = vadd.f32 %v587, %v701
    %v703 = vpop.f32.mrb[0].mxu0
    %v704 = vadd.f32 %v591, %v703
    %v705 = vpop.f32.mrb[0].mxu0
    %v706 = vpop.f32.mrb[0].mxu0
    %707 = vdwg.mxu0
    %v710 = vcombine.low %v702, %v704
    %712 = vst [vmem:[#allocation5] sm:$0xff] %v710
    // Predicated region
    $region26: #{tpu_custom_call.1} parent=1 // pred_check
      _
    $region27: #{tpu_custom_call.1} parent=1 // pred_check_branch
      %714 = sbr.rel (0) target = $region29
    $region28: #{tpu_custom_call.1} parent=1 // pred_region
      %s716 = ssub.s32 128, 128
      %717 = vsyncadd [#allocation4], %s716
      %s719 = sshll.u32 [#allocation5], 4
      %s720 = int_to_ptr.vmem [resolvable:$true] %s719
      %722 = dma.vmem_to_hbm [thread:$0]  %s720, 128, %s5, [#allocation4]
    $region29: #{tpu_custom_call.1} parent=1 // pred_fallthru
      _
    // Predicated region
    $region30: #{tpu_custom_call.1} parent=1 // pred_check
      _
    $region31: #{tpu_custom_call.1} parent=1 // pred_check_branch
      %724 = sbr.rel (0) target = $region33
    $region32: #{tpu_custom_call.1} parent=1 // pred_region
      %725 = dma.done [#allocation4], 128
    $region33: #{tpu_custom_call.1} parent=1 // pred_fallthru
      _
    %726 = vsyncpa [#allocation3], 1
    %727 = vsyncpa [#allocation4], 1

</llo_original>
